<compile_context>
chip_gen: v7x
topology: tpu7x:2x2x1
jax: 0.10.0
libtpu: 0.0.40
codegen_flags: <defaults>
</compile_context>

<pallas_src>
import math

import jax
import jax.numpy as jnp
from jax import lax
from jax.experimental import pallas as pl
from jax.experimental.pallas import tpu as pltpu


def _attn_head_kernel(x_ref, w_ref, bqkv_ref, bo_ref, o_ref):
    # Per-grid-step shapes (batch dim squeezed out by the BlockSpecs):
    #   x_ref:    (S, H)       input dtype (f32)
    #   w_ref:    (H, 3H + L)  MXU compute dtype (bf16): [wq*scale | wk | wv | wo]
    #   bqkv_ref: (1, 3H)      f32: [bq*scale | bk | bv]
    #   bo_ref:   (L, 1)       f32
    #   o_ref:    (L, S)       transposed output tile (lane-dense in S)
    s, h = x_ref.shape
    cdt = w_ref.dtype  # MXU operand dtype (bf16)

    w = w_ref[...]
    w_qkv = w[:, : 3 * h]          # (H, 3H)
    w_out = w[:, 3 * h:]           # (H, L)

    # Fused Q/K/V projection; 1/sqrt(H) already folded into the q columns.
    xc = x_ref[...].astype(cdt)
    qkv = jnp.dot(xc, w_qkv, preferred_element_type=jnp.float32) + bqkv_ref[...]
    q = qkv[:, :h]                 # (S, H) f32
    k = qkv[:, h:2 * h]            # (S, H) f32
    v = qkv[:, 2 * h:]             # (S, H) f32

    # scores[i, j] = q_i . k_j : contract over H directly (no k.T relayout).
    scores = lax.dot_general(q.astype(cdt), k.astype(cdt),
                             (((1,), (1,)), ((), ())),
                             preferred_element_type=jnp.float32)       # (S, S)

    # softmax over keys in f32; approx reciprocal lands on the EUP slot.
    m = jnp.max(scores, axis=-1, keepdims=True)
    p = jnp.exp(scores - m)
    denom = jnp.sum(p, axis=-1, keepdims=True)
    probs = p * pl.reciprocal(denom, approx=True)

    # attention_output = probs @ v ; dropout(p=0.1) is identity in eval mode.
    ctx = jnp.dot(probs.astype(cdt), v.astype(cdt),
                  preferred_element_type=jnp.float32)                  # (S, H)

    # out_proj, produced transposed (L, S) so the output store is lane-dense.
    out_t = lax.dot_general(w_out, ctx.astype(cdt),
                            (((0,), (1,)), ((), ())),
                            preferred_element_type=jnp.float32)        # (L, S)
    o_ref[...] = (out_t + bo_ref[...]).astype(o_ref.dtype)


def attention_head_forward(x, wq, bq, wk, bk, wv, bv, wo, bo,
                           compute_dtype=jnp.bfloat16):
    """x: (B, S, H). Weights in (in, out) layout; biases 1-D (out,)."""
    B, S, H = x.shape
    L = wo.shape[1]
    scale = 1.0 / math.sqrt(H)

    # Wrapper-side (one-time / free) parameter packing:
    #   * fold the softmax scale into the query projection,
    #   * fuse wq|wk|wv|wo into one (H, 3H+L) buffer cast to the MXU dtype,
    #   * fuse bq|bk|bv into one (1, 3H) f32 bias row,
    #   * reshape bo to (L, 1) to match the transposed output tile.
    w_all = jnp.concatenate([wq * scale, wk, wv, wo], axis=1).astype(compute_dtype)
    b_qkv = jnp.concatenate([bq * scale, bk, bv]).reshape(1, 3 * H).astype(jnp.float32)
    bo_c = bo.reshape(L, 1).astype(jnp.float32)

    out_t = pl.pallas_call(
        _attn_head_kernel,
        out_shape=jax.ShapeDtypeStruct((B, L, S), x.dtype),
        grid=(B,),
        in_specs=[
            pl.BlockSpec((None, S, H), lambda b: (b, 0, 0)),     # x: one batch row
            pl.BlockSpec((H, 3 * H + L), lambda b: (0, 0)),      # packed weights
            pl.BlockSpec((1, 3 * H), lambda b: (0, 0)),          # packed qkv bias
            pl.BlockSpec((L, 1), lambda b: (0, 0)),              # out bias (col)
        ],
        out_specs=pl.BlockSpec((None, L, S), lambda b: (b, 0, 0)),
        compiler_params=pltpu.CompilerParams(
            dimension_semantics=("parallel",)),                  # v7x: 2 TCs
    )(x, w_all, b_qkv, bo_c)

    return jnp.transpose(out_t, (0, 2, 1))                       # (B, S, L)


def _reference(x, wq, bq, wk, bk, wv, bv, wo, bo):
    q = x @ wq + bq
    k = x @ wk + bk
    v = x @ wv + bv
    scores = jnp.einsum("bqh,bkh->bqk", q, k) / math.sqrt(x.shape[-1])
    probs = jax.nn.softmax(scores, axis=-1)
    ctx = jnp.einsum("bqk,bkh->bqh", probs, v)
    return ctx @ wo + bo


if __name__ == "__main__":
    B, S, H, L = 2, 8, 32, 1

    key = jax.random.PRNGKey(0)
    keys = jax.random.split(key, 9)

    # Deterministic parameter init (Linear weights in (in, out) layout).
    lim = 1.0 / math.sqrt(H)
    wq = jax.random.uniform(keys[0], (H, H), jnp.float32, -lim, lim)
    bq = jax.random.uniform(keys[1], (H,), jnp.float32, -lim, lim)
    wk = jax.random.uniform(keys[2], (H, H), jnp.float32, -lim, lim)
    bk = jax.random.uniform(keys[3], (H,), jnp.float32, -lim, lim)
    wv = jax.random.uniform(keys[4], (H, H), jnp.float32, -lim, lim)
    bv = jax.random.uniform(keys[5], (H,), jnp.float32, -lim, lim)
    wo = jax.random.uniform(keys[6], (H, L), jnp.float32, -lim, lim)
    bo = jax.random.uniform(keys[7], (L,), jnp.float32, -lim, lim)

    x = jax.random.normal(keys[8], (B, S, H), jnp.float32)

    out = attention_head_forward(x, wq, bq, wk, bk, wv, bv, wo, bo)
    out = jax.block_until_ready(out)

    ref = _reference(x, wq, bq, wk, bk, wv, bv, wo, bo)
    assert out.shape == (B, S, L), out.shape
    # Tolerance reflects bf16 MXU operands (f32 accumulate) + approx reciprocal.
    assert jnp.allclose(out, ref, atol=2e-2, rtol=2e-2), "mismatch vs reference"

    print("KERNEL_OK")
</pallas_src>

<mosaic_0001>
module attributes {stable_mosaic.version = 11 : i64} {
  func.func @_attn_head_kernel(%arg0: i32, %arg1: memref<1x8x32xf32, #tpu.memory_space<vmem>>, %arg2: memref<32x97xbf16, #tpu.memory_space<vmem>>, %arg3: memref<1x96xf32, #tpu.memory_space<vmem>>, %arg4: memref<1x1xf32, #tpu.memory_space<vmem>>, %arg5: memref<1x1x8xf32, #tpu.memory_space<vmem>>) attributes {dimension_semantics = [#tpu.dimension_semantics<parallel>], iteration_bounds = array<i64: 2>, scalar_prefetch = 0 : i64, scratch_operands = 0 : i64, tpu.core_type = #tpu.core_type<tc>, window_params = [{transform_indices = @transform_0, window_bounds = array<i64: 1, 8, 32>}, {pipeline_mode = #tpu.pipeline_mode<synchronous>, transform_indices = @transform_1, window_bounds = array<i64: 32, 97>}, {pipeline_mode = #tpu.pipeline_mode<synchronous>, transform_indices = @transform_2, window_bounds = array<i64: 1, 96>}, {pipeline_mode = #tpu.pipeline_mode<synchronous>, transform_indices = @transform_3, window_bounds = array<i64: 1, 1>}, {transform_indices = @transform_4, window_bounds = array<i64: 1, 1, 8>}]} {
    %c0 = arith.constant 0 : index
    %c0_0 = arith.constant 0 : index
    %0 = vector.load %arg2[%c0, %c0_0] : memref<32x97xbf16, #tpu.memory_space<vmem>>, vector<32x97xbf16>
    %1 = vector.extract_strided_slice %0 {offsets = [0, 0], sizes = [32, 96], strides = [1, 1]} : vector<32x97xbf16> to vector<32x96xbf16>
    %2 = vector.extract_strided_slice %0 {offsets = [0, 96], sizes = [32, 1], strides = [1, 1]} : vector<32x97xbf16> to vector<32x1xbf16>
    %c0_1 = arith.constant 0 : index
    %c0_2 = arith.constant 0 : index
    %c0_3 = arith.constant 0 : index
    %3 = vector.load %arg1[%c0_1, %c0_2, %c0_3] : memref<1x8x32xf32, #tpu.memory_space<vmem>>, vector<1x8x32xf32>
    %4 = vector.shape_cast %3 : vector<1x8x32xf32> to vector<8x32xf32>
    %5 = arith.truncf %4 : vector<8x32xf32> to vector<8x32xbf16>
    %cst = arith.constant dense<0.000000e+00> : vector<8x96xf32>
    %6 = tpu.matmul %5, %1, %cst {dimension_numbers = #tpu.dot_dimension_numbers<[1], [0], [0], [1], [0, 0, 1, 1], [], []>} : vector<8x32xbf16>, vector<32x96xbf16>, vector<8x96xf32> -> vector<8x96xf32>
    %c0_4 = arith.constant 0 : index
    %c0_5 = arith.constant 0 : index
    %7 = vector.load %arg3[%c0_4, %c0_5] : memref<1x96xf32, #tpu.memory_space<vmem>>, vector<1x96xf32>
    %8 = vector.broadcast %7 : vector<1x96xf32> to vector<8x96xf32>
    %9 = arith.addf %6, %8 : vector<8x96xf32>
    %10 = vector.extract_strided_slice %9 {offsets = [0, 0], sizes = [8, 32], strides = [1, 1]} : vector<8x96xf32> to vector<8x32xf32>
    %11 = vector.extract_strided_slice %9 {offsets = [0, 32], sizes = [8, 32], strides = [1, 1]} : vector<8x96xf32> to vector<8x32xf32>
    %12 = vector.extract_strided_slice %9 {offsets = [0, 64], sizes = [8, 32], strides = [1, 1]} : vector<8x96xf32> to vector<8x32xf32>
    %13 = arith.truncf %10 : vector<8x32xf32> to vector<8x32xbf16>
    %14 = arith.truncf %11 : vector<8x32xf32> to vector<8x32xbf16>
    %cst_6 = arith.constant dense<0.000000e+00> : vector<8x8xf32>
    %15 = tpu.matmul %13, %14, %cst_6 {dimension_numbers = #tpu.dot_dimension_numbers<[1], [1], [0], [0], [0, 0, 1, 0], [], []>} : vector<8x32xbf16>, vector<8x32xbf16>, vector<8x8xf32> -> vector<8x8xf32>
    %cst_7 = arith.constant dense<0xFF800000> : vector<8xf32>
    %16 = vector.multi_reduction <maximumf>, %15, %cst_7 [1] : vector<8x8xf32> to vector<8xf32>
    %17 = vector.shape_cast %16 : vector<8xf32> to vector<8x1xf32>
    %18 = vector.broadcast %17 : vector<8x1xf32> to vector<8x8xf32>
    %19 = arith.subf %15, %18 : vector<8x8xf32>
    %20 = math.exp %19 : vector<8x8xf32>
    %cst_8 = arith.constant dense<0.000000e+00> : vector<8xf32>
    %21 = vector.multi_reduction <add>, %20, %cst_8 [1] : vector<8x8xf32> to vector<8xf32>
    %22 = vector.shape_cast %21 : vector<8xf32> to vector<8x1xf32>
    %23 = tpu.reciprocal %22 {approx = true} : vector<8x1xf32> -> vector<8x1xf32>
    %24 = vector.broadcast %23 : vector<8x1xf32> to vector<8x8xf32>
    %25 = arith.mulf %20, %24 : vector<8x8xf32>
    %26 = arith.truncf %25 : vector<8x8xf32> to vector<8x8xbf16>
    %27 = arith.truncf %12 : vector<8x32xf32> to vector<8x32xbf16>
    %cst_9 = arith.constant dense<0.000000e+00> : vector<8x32xf32>
    %28 = tpu.matmul %26, %27, %cst_9 {dimension_numbers = #tpu.dot_dimension_numbers<[1], [0], [0], [1], [0, 0, 1, 1], [], []>} : vector<8x8xbf16>, vector<8x32xbf16>, vector<8x32xf32> -> vector<8x32xf32>
    %29 = arith.truncf %28 : vector<8x32xf32> to vector<8x32xbf16>
    %cst_10 = arith.constant dense<0.000000e+00> : vector<1x8xf32>
    %30 = tpu.matmul %2, %29, %cst_10 {dimension_numbers = #tpu.dot_dimension_numbers<[0], [1], [1], [0], [0, 1, 1, 0], [], []>} : vector<32x1xbf16>, vector<8x32xbf16>, vector<1x8xf32> -> vector<1x8xf32>
    %c0_11 = arith.constant 0 : index
    %c0_12 = arith.constant 0 : index
    %31 = vector.load %arg4[%c0_11, %c0_12] : memref<1x1xf32, #tpu.memory_space<vmem>>, vector<1x1xf32>
    %32 = vector.broadcast %31 : vector<1x1xf32> to vector<1x8xf32>
    %33 = arith.addf %30, %32 : vector<1x8xf32>
    %c0_13 = arith.constant 0 : index
    %c0_14 = arith.constant 0 : index
    %c0_15 = arith.constant 0 : index
    %34 = vector.load %arg5[%c0_13, %c0_14, %c0_15] : memref<1x1x8xf32, #tpu.memory_space<vmem>>, vector<1x1x8xf32>
    %35 = vector.shape_cast %34 : vector<1x1x8xf32> to vector<1x8xf32>
    %36 = vector.shape_cast %33 : vector<1x8xf32> to vector<1x1x8xf32>
    tpu.vector_store %arg5[%c0_13, %c0_14, %c0_15], %36 {strides = array<i32>} : memref<1x1x8xf32, #tpu.memory_space<vmem>>, vector<1x1x8xf32>,
    return
  }
  func.func @transform_0(%arg0: i32) -> (i32, i32, i32) {
    %c0_i32 = arith.constant 0 : i32
    %c0_i32_0 = arith.constant 0 : i32
    %c0_i32_1 = arith.constant 0 : i32
    return %arg0, %c0_i32, %c0_i32_0 : i32, i32, i32
  }
  func.func @transform_1(%arg0: i32) -> (i32, i32) {
    %c0_i32 = arith.constant 0 : i32
    %c0_i32_0 = arith.constant 0 : i32
    %c0_i32_1 = arith.constant 0 : i32
    return %c0_i32, %c0_i32_0 : i32, i32
  }
  func.func @transform_2(%arg0: i32) -> (i32, i32) {
    %c0_i32 = arith.constant 0 : i32
    %c0_i32_0 = arith.constant 0 : i32
    %c0_i32_1 = arith.constant 0 : i32
    return %c0_i32, %c0_i32_0 : i32, i32
  }
  func.func @transform_3(%arg0: i32) -> (i32, i32) {
    %c0_i32 = arith.constant 0 : i32
    %c0_i32_0 = arith.constant 0 : i32
    %c0_i32_1 = arith.constant 0 : i32
    return %c0_i32, %c0_i32_0 : i32, i32
  }
  func.func @transform_4(%arg0: i32) -> (i32, i32, i32) {
    %c0_i32 = arith.constant 0 : i32
    %c0_i32_0 = arith.constant 0 : i32
    %c0_i32_1 = arith.constant 0 : i32
    return %arg0, %c0_i32, %c0_i32_0 : i32, i32, i32
  }
}

</mosaic_0001>

<llo_original>
// kernel: tpu_custom_call.1
$region0: #{tpu_custom_call.1}
  #allocation0 [shape = 'u32[]', space=smem, size = 0x4, offset = 0x4, fixed_abs, tag = 'smem constant byte address 0x4 - core index']
  #allocation1 [shape = 'u32[144,128]{1,0:T(1,128)}', space=vmem, size = 0x12000, scoped, tag = 'internal scratch']
  #allocation2 [shape = 'f32[1,1]{1,0:T(1,128)S(1)}', space=vmem, size = 0x200, scoped, tag = 'scoped memory for tpu_custom_call.1']
  %s0 = inlined_call_operand.hbm [shape: f32[2,8,32], index: 0, kind: input, shape index: {}]
  %s1 = inlined_call_operand.hbm [shape: bf16[32,97], index: 1, kind: input, shape index: {}]
  %s2 = inlined_call_operand.vmem [shape: f32[1,96], index: 2, kind: input, shape index: {}]
  %s3 = inlined_call_operand.<no memory space> [shape: f32[1,1], index: 3, kind: input, shape index: {}]
  %s4 = inlined_call_operand.hbm [shape: f32[2,1,8], index: 4, kind: output, shape index: {}]
  %s5 = sld [smem:[#allocation0]]
  $region57: #{tpu_custom_call.1} parent=0
    _
  %s7 = ssub.s32 1, %s5
  %s8 = scalar_select 0, %s7, %s5
  %v9 = vstv %s3
  %10 = vst [vmem:[#allocation2] sm:$0x1] %v9
  $region1: #{tpu_custom_call.1} parent=0
    #allocation3 [shape = 'u8[8192]{0}', space=vmem, size = 0x2000, scoped, tag = 'input window, operand 0']
    #allocation4 [shape = 's32[2]{0}', space=sflag, size = 0x8, scoped, tag = 'scoped memory for tpu_custom_call.1']
    #allocation5 [shape = 's32[2]{0}', space=sflag, size = 0x8, scoped, tag = 'scoped memory for tpu_custom_call.1']
    #allocation6 [shape = 'u8[8192]{0}', space=vmem, size = 0x2000, scoped, tag = 'input window, operand 1, single buffered']
    #allocation7 [shape = 's32[1]{0}', space=sflag, size = 0x4, scoped, tag = 'scoped memory for tpu_custom_call.1']
    #allocation8 [shape = 'u8[1024]{0}', space=vmem, size = 0x400, scoped, tag = 'output window, operand 0']
    %11 = vsyncpa [#allocation4], 0
    %s12 = scalar_lea.sflag [#allocation4], 1
    %13 = vsyncpa %s12, 0
    %14 = vsyncpa [#allocation7], 0
    %15 = vsyncpa [#allocation5], 0
    %s16 = scalar_lea.sflag [#allocation5], 1
    %17 = vsyncpa %s16, 0
    loop: start=0, step=1, limit=4
    $region2: #{tpu_custom_call.1} parent=1 // loop_pre_header
      _
    $region3: #{tpu_custom_call.1} parent=1 // loop_header
      %s19 = sphi 0, %s23
      %p20 = scmp.ge.s32.totalorder %s19, 4
      %s29 = sphi 0, %s31
      %s32 = sphi 0, %s29
      %s33 = sphi 0, %s32
      %s49 = sphi 0, %s33
      %s53 = sphi 0, %s53
      %s55 = sphi 0, %s53
      %s56 = sphi 0, %s55
      %s70 = sphi 0, %s56
      %s74 = sphi 0, %s74
      %s76 = sphi 0, %s74
      %s77 = sphi 0, %s76
      %s91 = sphi 0, %s77
      %s95 = sphi 0, %s95
      %s97 = sphi 0, %s95
      %s98 = sphi 0, %s97
      %s112 = sphi 0, %s98
      %s118 = sphi 0, %s120
      %s121 = sphi 0, %s118
      %s122 = sphi 0, %s121
      %s138 = sphi 0, %s122
    $region4: #{tpu_custom_call.1} parent=1 // loop_header_branch
      %22 = sbr.rel (%p20) target = $region8
    $region5: #{tpu_custom_call.1} parent=1 // loop_body
      %s24 = ssub.s32 %s19, 1
      %s25 = ssub.s32 %s19, 2
      %s26 = sadd.s32 %s19, 1
      %s27 = ssub.s32 %s19, %s26
      %p28 = scmp.eq.s32.totalorder %s27, 0
      %s30 = sadd.s32 %s29, 1
      %s31 = scalar_select %p28, %s29, %s30
      %p34 = pneg %p28
      %p35 = scmp.eq.s32.totalorder %s19, 1
      %p36 = por %p34, %p35
      %p37 = scmp.ne.s32.totalorder %s29, %s32
      %p38 = scmp.eq.s32.totalorder %s19, 0
      %p39 = por %p37, %p38
      %p40 = scmp.ne.s32.totalorder %s29, %s32
      %p41 = scmp.eq.s32.totalorder %s24, 1
      %p42 = por %p40, %p41
      %p43 = scmp.ne.s32.totalorder %s32, %s33
      %p44 = scmp.eq.s32.totalorder %s24, 0
      %p45 = por %p43, %p44
      %p46 = scmp.ne.s32.totalorder %s32, %s33
      %p47 = scmp.eq.s32.totalorder %s25, 1
      %p48 = por %p46, %p47
      %p50 = scmp.ne.s32.totalorder %s33, %s49
      %p51 = scmp.eq.s32.totalorder %s25, 0
      %p52 = por %p50, %p51
      %s54 = sadd.s32 %s53, 1
      %p57 = scmp.eq.s32.totalorder %s19, 1
      %p58 = scmp.ne.s32.totalorder %s53, %s55
      %p59 = scmp.eq.s32.totalorder %s19, 0
      %p60 = por %p58, %p59
      %p61 = scmp.ne.s32.totalorder %s53, %s55
      %p62 = scmp.eq.s32.totalorder %s24, 1
      %p63 = por %p61, %p62
      %p64 = scmp.ne.s32.totalorder %s55, %s56
      %p65 = scmp.eq.s32.totalorder %s24, 0
      %p66 = por %p64, %p65
      %p67 = scmp.ne.s32.totalorder %s55, %s56
      %p68 = scmp.eq.s32.totalorder %s25, 1
      %p69 = por %p67, %p68
      %p71 = scmp.ne.s32.totalorder %s56, %s70
      %p72 = scmp.eq.s32.totalorder %s25, 0
      %p73 = por %p71, %p72
      %s75 = sadd.s32 %s74, 1
      %p78 = scmp.eq.s32.totalorder %s19, 1
      %p79 = scmp.ne.s32.totalorder %s74, %s76
      %p80 = scmp.eq.s32.totalorder %s19, 0
      %p81 = por %p79, %p80
      %p82 = scmp.ne.s32.totalorder %s74, %s76
      %p83 = scmp.eq.s32.totalorder %s24, 1
      %p84 = por %p82, %p83
      %p85 = scmp.ne.s32.totalorder %s76, %s77
      %p86 = scmp.eq.s32.totalorder %s24, 0
      %p87 = por %p85, %p86
      %p88 = scmp.ne.s32.totalorder %s76, %s77
      %p89 = scmp.eq.s32.totalorder %s25, 1
      %p90 = por %p88, %p89
      %p92 = scmp.ne.s32.totalorder %s77, %s91
      %p93 = scmp.eq.s32.totalorder %s25, 0
      %p94 = por %p92, %p93
      %s96 = sadd.s32 %s95, 1
      %p99 = scmp.eq.s32.totalorder %s19, 1
      %p100 = scmp.ne.s32.totalorder %s95, %s97
      %p101 = scmp.eq.s32.totalorder %s19, 0
      %p102 = por %p100, %p101
      %p103 = scmp.ne.s32.totalorder %s95, %s97
      %p104 = scmp.eq.s32.totalorder %s24, 1
      %p105 = por %p103, %p104
      %p106 = scmp.ne.s32.totalorder %s97, %s98
      %p107 = scmp.eq.s32.totalorder %s24, 0
      %p108 = por %p106, %p107
      %p109 = scmp.ne.s32.totalorder %s97, %s98
      %p110 = scmp.eq.s32.totalorder %s25, 1
      %p111 = por %p109, %p110
      %p113 = scmp.ne.s32.totalorder %s98, %s112
      %p114 = scmp.eq.s32.totalorder %s25, 0
      %p115 = por %p113, %p114
      %s116 = ssub.s32 %s19, %s26
      %p117 = scmp.eq.s32.totalorder %s116, 0
      %s119 = sadd.s32 %s118, 1
      %s120 = scalar_select %p117, %s118, %s119
      %p123 = pneg %p117
      %p124 = scmp.eq.s32.totalorder %s19, 1
      %p125 = por %p123, %p124
      %p126 = scmp.ne.s32.totalorder %s118, %s121
      %p127 = scmp.eq.s32.totalorder %s19, 0
      %p128 = por %p126, %p127
      %p129 = scmp.ne.s32.totalorder %s118, %s121
      %p130 = scmp.eq.s32.totalorder %s24, 1
      %p131 = por %p129, %p130
      %p132 = scmp.ne.s32.totalorder %s121, %s122
      %p133 = scmp.eq.s32.totalorder %s24, 0
      %p134 = por %p132, %p133
      %p135 = scmp.ne.s32.totalorder %s121, %s122
      %p136 = scmp.eq.s32.totalorder %s25, 1
      %p137 = por %p135, %p136
      %p139 = scmp.ne.s32.totalorder %s122, %s138
      %p140 = scmp.eq.s32.totalorder %s25, 0
      %p141 = por %p139, %p140
      %p142 = scmp.le.s32.totalorder 1, %s19
      %p143 = scmp.lt.s32.totalorder %s19, 3
      %p144 = pnand %p142, %p143
      %p145 = pneg %p144
      // Predicated region
      $region9: #{tpu_custom_call.1} parent=5 // pred_check
        _
      $region10: #{tpu_custom_call.1} parent=5 // pred_check_branch
        %147 = sbr.rel (%p144) target = $region12
      $region11: #{tpu_custom_call.1} parent=5 // pred_region
        %s148 = ssub.s32 %s19, 1
        // Predicated region
        $region13: #{tpu_custom_call.1} parent=11 // pred_check
          %p149 = pneg %p66
        $region14: #{tpu_custom_call.1} parent=11 // pred_check_branch
          %151 = sbr.rel (%p149) target = $region16
        $region15: #{tpu_custom_call.1} parent=11 // pred_region
          %s153 = ssub.s32 256, 256
          %154 = vsyncadd [#allocation7], %s153
          %s155 = sshll.u32 [#allocation6], 4
          %s156 = int_to_ptr.vmem [resolvable:$true] %s155
          %161 = dma.hbm_to_vmem [thread:$0]  %s1, 256, %s156, [#allocation7], 64, 64, 4
        $region16: #{tpu_custom_call.1} parent=11 // pred_fallthru
          _
        // Predicated region
        $region17: #{tpu_custom_call.1} parent=11 // pred_check
          %p162 = pneg %p87
        $region18: #{tpu_custom_call.1} parent=11 // pred_check_branch
          %164 = sbr.rel (%p162) target = $region20
        $region19: #{tpu_custom_call.1} parent=11 // pred_region
          _
        $region20: #{tpu_custom_call.1} parent=11 // pred_fallthru
          _
        // Predicated region
        $region21: #{tpu_custom_call.1} parent=11 // pred_check
          %p165 = pneg %p108
        $region22: #{tpu_custom_call.1} parent=11 // pred_check_branch
          %167 = sbr.rel (%p165) target = $region24
        $region23: #{tpu_custom_call.1} parent=11 // pred_region
          _
        $region24: #{tpu_custom_call.1} parent=11 // pred_fallthru
          _
      $region12: #{tpu_custom_call.1} parent=5 // pred_fallthru
        _
      %p168 = scmp.lt.s32.totalorder %s19, 2
      // Predicated region
      $region25: #{tpu_custom_call.1} parent=5 // pred_check
        %p169 = pneg %p168
      $region26: #{tpu_custom_call.1} parent=5 // pred_check_branch
        %171 = sbr.rel (%p169) target = $region28
      $region27: #{tpu_custom_call.1} parent=5 // pred_region
        // Predicated region
        $region29: #{tpu_custom_call.1} parent=27 // pred_check
          %p172 = pneg %p39
        $region30: #{tpu_custom_call.1} parent=27 // pred_check_branch
          %174 = sbr.rel (%p172) target = $region32
        $region31: #{tpu_custom_call.1} parent=27 // pred_region
          %s175 = sand.u32 %s29, 1
          %s176 = scalar_lea.sflag [#allocation4], %s175
          %s177 = sand.u32 %s29, 1
          %s178 = smul.addr %s177, 8
          %s179 = scalar_lea.vmem [#allocation3], %s178
          %s181 = ssub.s32 128, 128
          %182 = vsyncadd %s176, %s181
          %s183 = smul.addr %s19, 128
          %s184 = scalar_lea.hbm %s0, %s183
          %s186 = sshll.u32 %s179, 4
          %s187 = int_to_ptr.vmem [resolvable:$true] %s186
          %189 = dma.hbm_to_vmem [thread:$0]  %s184, 128, %s187, %s176
        $region32: #{tpu_custom_call.1} parent=27 // pred_fallthru
          _
      $region28: #{tpu_custom_call.1} parent=5 // pred_fallthru
        _
      %p190 = scmp.le.s32.totalorder 1, %s19
      %p191 = scmp.lt.s32.totalorder %s19, 3
      %p192 = pnand %p190, %p191
      %p193 = pneg %p192
      // Predicated region
      $region33: #{tpu_custom_call.1} parent=5 // pred_check
        _
      $region34: #{tpu_custom_call.1} parent=5 // pred_check_branch
        %195 = sbr.rel (%p192) target = $region36
      $region35: #{tpu_custom_call.1} parent=5 // pred_region
        %s196 = ssub.s32 %s19, 1
        %s197 = sand.u32 %s32, 1
        %s198 = scalar_lea.sflag [#allocation4], %s197
        %s199 = sand.u32 %s32, 1
        %s200 = smul.addr %s199, 8
        %s201 = scalar_lea.vmem [#allocation3], %s200
        // Predicated region
        $region37: #{tpu_custom_call.1} parent=35 // pred_check
          %p202 = pneg %p45
        $region38: #{tpu_custom_call.1} parent=35 // pred_check_branch
          %204 = sbr.rel (%p202) target = $region40
        $region39: #{tpu_custom_call.1} parent=35 // pred_region
          %205 = dma.done %s198, 128
        $region40: #{tpu_custom_call.1} parent=35 // pred_fallthru
          _
        // Predicated region
        $region41: #{tpu_custom_call.1} parent=35 // pred_check
          %p206 = pneg %p66
        $region42: #{tpu_custom_call.1} parent=35 // pred_check_branch
          %208 = sbr.rel (%p206) target = $region44
        $region43: #{tpu_custom_call.1} parent=35 // pred_region
          %209 = dma.done [#allocation7], 256
        $region44: #{tpu_custom_call.1} parent=35 // pred_fallthru
          _
        %s210 = sand.u32 %s32, 1
        %s211 = scalar_lea.sflag [#allocation4], %s210
        %s212 = sand.u32 %s32, 1
        %s213 = smul.addr %s212, 8
        %s214 = scalar_lea.vmem [#allocation3], %s213
        %p215 = pneg %p45
        %p216 = pneg %p42
        %p217 = pneg %p66
        %p218 = pneg %p63
        %p219 = pneg %p87
        %p220 = pneg %p84
        %p221 = pneg %p108
        %p222 = pneg %p105
        %p223 = pneg %p134
        %p224 = pneg %p131
        %s225 = sand.u32 %s121, 1
        %s226 = scalar_lea.sflag [#allocation5], %s225
        %s227 = sand.u32 %s121, 1
        %s228 = scalar_lea.vmem [#allocation8], %s227
        %v230 = vld [vmem:[#allocation6] sm:$0xf]
        %v231 = vld [vmem:[#allocation6 + $0x4] sm:$0xf]
        %v232 = vld [vmem:[#allocation6 + $0x8] sm:$0xf]
        %v233 = vld [vmem:[#allocation6 + $0xc] sm:$0xf]
        %v234 = vld [vmem:[%s201] sm:$0xff]
        %v235 = vpack.c.bf16 %v234, %v234
        %v236 = vld [vmem:[%s2] sm:$0x1]
        %v238 = vlaneseq
        %v239 = vshrl.u32 %v238, 7
        %v240 = vsub.s32 0, %v239
        %v241 = vrot.slane %v236, %v240
        %v247 = vunpack.c.l.b16 %v230
        %v248 = vunpack.c.l.b16 %v231
        %v249 = vunpack.c.l.b16 %v232
        %v250 = vunpack.c.l.b16 %v233
        %v251 = vpack.c.b16 %v248, %v247
        %v252 = vpack.c.b16 %v250, %v249
        %vm255 = vcmask 261120
        %v257 = vsel %vm255, %v235, 0
        %259 = vmatprep.subr.bf16.mxu0 0
        %260 = vmatpush1.bf16.msra.mxu0 %v251
        %261 = vmatprep.subr.bf16.mxu0 0
        %262 = vmatpush1.bf16.msra.mxu0 %v252
        %263 = vmatprep.subr.bf16.mxu0 0
        %264 = vmatpush1.bf16.msra.mxu0 0
        %265 = vmatprep.subr.bf16.mxu0 0
        %266 = vmatpush1.bf16.msra.mxu0 0
        %267 = vmatprep.subr.bf16.mxu0 0
        %268 = vmatpush1.bf16.msra.mxu0 0
        %269 = vmatprep.subr.bf16.mxu0 0
        %270 = vmatpush1.bf16.msra.mxu0 0
        %271 = vmatprep.subr.bf16.mxu0 0
        %272 = vmatpush1.bf16.msra.mxu0 0
        %273 = vmatprep.subr.bf16.mxu0 0
        %274 = vmatpush1.bf16.msra.mxu0 0
        %275 = vmatprep.subr.bf16.mxu0 0
        %276 = vmatpush1.bf16.msra.mxu0 0
        %277 = vmatprep.subr.bf16.mxu0 0
        %278 = vmatpush1.bf16.msra.mxu0 0
        %279 = vmatprep.subr.bf16.mxu0 0
        %280 = vmatpush1.bf16.msra.mxu0 0
        %281 = vmatprep.subr.bf16.mxu0 0
        %282 = vmatpush1.bf16.msra.mxu0 0
        %283 = vmatprep.subr.bf16.mxu0 0
        %284 = vmatpush1.bf16.msra.mxu0 0
        %285 = vmatprep.subr.bf16.mxu0 0
        %286 = vmatpush1.bf16.msra.mxu0 0
        %287 = vmatprep.subr.bf16.mxu0 0
        %288 = vmatpush1.bf16.msra.mxu0 0
        %289 = vmatprep.subr.bf16.mxu0 0
        %290 = vmatpush1.bf16.msra.mxu0 0
        %291 = vmatprep.mubr.bf16.mxu0 0
        %292 = vmatmul.mubr.bf16.gmra.mrb[0].mxu0 %v257
        %v293 = vpop.f32.mrb[0].mxu0
        %v294 = vadd.f32 %v241, %v293
        %v295 = vpop.f32.mrb[0].mxu0
        %v296 = vpop.f32.mrb[0].mxu0
        %v297 = vpop.f32.mrb[0].mxu0
        %298 = vdwg.mxu0
        %v299 = vpack.c.bf16 %v294, %v294
        %301 = vrot.lane.b32.xlu0 %v299, 96
        %v302 = vpop.permute.xlu0 %301
        %v304 = vsel %vm255, %v299, 0
        %v307 = vsel %vm255, %v302, 0
        %309 = vmatprep.subr.bf16.mxu0 0
        %310 = vmatpush1.bf16.xpose.msra.mxu0 %v307
        %311 = vmatprep.subr.bf16.mxu0 0
        %312 = vmatpush1.bf16.xpose.msra.mxu0 0
        %313 = vmatprep.subr.bf16.mxu0 0
        %314 = vmatpush1.bf16.xpose.msra.mxu0 0
        %315 = vmatprep.subr.bf16.mxu0 0
        %316 = vmatpush1.bf16.xpose.msra.mxu0 0
        %317 = vmatprep.subr.bf16.mxu0 0
        %318 = vmatpush1.bf16.xpose.msra.mxu0 0
        %319 = vmatprep.subr.bf16.mxu0 0
        %320 = vmatpush1.bf16.xpose.msra.mxu0 0
        %321 = vmatprep.subr.bf16.mxu0 0
        %322 = vmatpush1.bf16.xpose.msra.mxu0 0
        %323 = vmatprep.subr.bf16.mxu0 0
        %324 = vmatpush1.bf16.xpose.msra.mxu0 0
        %325 = vmatprep.subr.bf16.mxu0 0
        %326 = vmatpush1.bf16.xpose.msra.mxu0 0
        %327 = vmatprep.subr.bf16.mxu0 0
        %328 = vmatpush1.bf16.xpose.msra.mxu0 0
        %329 = vmatprep.subr.bf16.mxu0 0
        %330 = vmatpush1.bf16.xpose.msra.mxu0 0
        %331 = vmatprep.subr.bf16.mxu0 0
        %332 = vmatpush1.bf16.xpose.msra.mxu0 0
        %333 = vmatprep.subr.bf16.mxu0 0
        %334 = vmatpush1.bf16.xpose.msra.mxu0 0
        %335 = vmatprep.subr.bf16.mxu0 0
        %336 = vmatpush1.bf16.xpose.msra.mxu0 0
        %337 = vmatprep.subr.bf16.mxu0 0
        %338 = vmatpush1.bf16.xpose.msra.mxu0 0
        %339 = vmatprep.subr.bf16.mxu0 0
        %340 = vmatpush1.bf16.xpose.msra.mxu0 0
        %341 = vmatprep.mubr.bf16.mxu0 0
        %342 = vmatmul.mubr.bf16.gmra.mrb[0].mxu0 %v304
        %v343 = vpop.f32.mrb[0].mxu0
        %v344 = vadd.f32 0.0, %v343
        %v345 = vpop.f32.mrb[0].mxu0
        %v346 = vpop.f32.mrb[0].mxu0
        %v347 = vpop.f32.mrb[0].mxu0
        %348 = vdwg.mxu0
        %vm349 = vcmask 64512
        %v350 = vsel %vm349, %v344, -inf
        %351 = vmax.xlane.f32.xlu0 %v350
        %v352 = vpop.xlane.xlu0 %351
        %v353 = vsub.f32 %v344, %v352
        %v354 = vmul.f32 %v353, 1.442695
        %v355 = vpow.pop %v354
        %v356 = vsel %vm349, %v355, 0.0
        %357 = vadd.xlane.f32.xlu0 %v356
        %v358 = vpop.xlane.xlu0 %357
        %v359 = vrcp.pop %v358
        %v360 = vmul.f32 %v355, %v359
        %v361 = vpack.c.bf16 %v360, %v360
        %362 = vrot.lane.b32.xlu0 %v299, 64
        %v363 = vpop.permute.xlu0 %362
        %v365 = vsel %vm349, %v361, 0
        %vm367 = vcmask 1043456
        %v369 = vsel %vm367, %v363, 0
        %371 = vmatprep.subr.bf16.mxu0 0
        %372 = vmatpush1.bf16.msra.mxu0 %v369
        %373 = vmatprep.subr.bf16.mxu0 0
        %374 = vmatpush1.bf16.msra.mxu0 0
        %375 = vmatprep.subr.bf16.mxu0 0
        %376 = vmatpush1.bf16.msra.mxu0 0
        %377 = vmatprep.subr.bf16.mxu0 0
        %378 = vmatpush1.bf16.msra.mxu0 0
        %379 = vmatprep.subr.bf16.mxu0 0
        %380 = vmatpush1.bf16.msra.mxu0 0
        %381 = vmatprep.subr.bf16.mxu0 0
        %382 = vmatpush1.bf16.msra.mxu0 0
        %383 = vmatprep.subr.bf16.mxu0 0
        %384 = vmatpush1.bf16.msra.mxu0 0
        %385 = vmatprep.subr.bf16.mxu0 0
        %386 = vmatpush1.bf16.msra.mxu0 0
        %387 = vmatprep.subr.bf16.mxu0 0
        %388 = vmatpush1.bf16.msra.mxu0 0
        %389 = vmatprep.subr.bf16.mxu0 0
        %390 = vmatpush1.bf16.msra.mxu0 0
        %391 = vmatprep.subr.bf16.mxu0 0
        %392 = vmatpush1.bf16.msra.mxu0 0
        %393 = vmatprep.subr.bf16.mxu0 0
        %394 = vmatpush1.bf16.msra.mxu0 0
        %395 = vmatprep.subr.bf16.mxu0 0
        %396 = vmatpush1.bf16.msra.mxu0 0
        %397 = vmatprep.subr.bf16.mxu0 0
        %398 = vmatpush1.bf16.msra.mxu0 0
        %399 = vmatprep.subr.bf16.mxu0 0
        %400 = vmatpush1.bf16.msra.mxu0 0
        %401 = vmatprep.subr.bf16.mxu0 0
        %402 = vmatpush1.bf16.msra.mxu0 0
        %403 = vmatprep.mubr.bf16.mxu0 0
        %404 = vmatmul.mubr.bf16.gmra.mrb[0].mxu0 %v365
        %v405 = vpop.f32.mrb[0].mxu0
        %v406 = vadd.f32 0.0, %v405
        %v407 = vpop.f32.mrb[0].mxu0
        %v408 = vpop.f32.mrb[0].mxu0
        %v409 = vpop.f32.mrb[0].mxu0
        %410 = vdwg.mxu0
        %v411 = vpack.c.bf16 %v406, %v406
        %v412 = vld [vmem:[#allocation2] sm:$0x1]
        %414 = vset.pattern.permute.xlu0 0
        %415 = vperm.xlu0 %414, %v412
        %v416 = vpop.permute.xlu0 %415
        %v418 = vlaneseq
        %v419 = vshrl.u32 %v418, 7
        %v420 = vsub.s32 0, %v419
        %v421 = vrot.slane %v416, %v420
        %422 = vrot.lane.b32.xlu0 %v251, 32
        %v423 = vpop.permute.xlu0 %422
        %424 = vrot.lane.b32.xlu0 %v252, 32
        %v425 = vpop.permute.xlu0 %424
        %428 = vxpose.xlu0.c.b16.start [1/8] %v423, 128
        %429 = vxpose.xlu0.c.b16.cont [2/8] %v425, 128
        %430 = vxpose.xlu0.c.b16.cont [3/8] 0, 128
        %431 = vxpose.xlu0.c.b16.cont [4/8] 0, 128
        %432 = vxpose.xlu0.c.b16.cont [5/8] 0, 128
        %433 = vxpose.xlu0.c.b16.cont [6/8] 0, 128
        %434 = vxpose.xlu0.c.b16.cont [7/8] 0, 128
        %435 = vxpose.xlu0.c.b16.end [8/8] 0, 128
        %v436 = vpop.trf.xlu0
        %v437 = vpop.trf.xlu0
        %v438 = vpop.trf.xlu0
        %v439 = vpop.trf.xlu0
        %v440 = vpop.trf.xlu0
        %v441 = vpop.trf.xlu0
        %v442 = vpop.trf.xlu0
        %v443 = vpop.trf.xlu0
        %v445 = vsel %vm255, %v436, 0
        %v448 = vsel %vm255, %v411, 0
        %450 = vmatprep.subr.bf16.mxu0 0
        %451 = vmatpush1.bf16.xpose.msra.mxu0 %v448
        %452 = vmatprep.subr.bf16.mxu0 0
        %453 = vmatpush1.bf16.xpose.msra.mxu0 0
        %454 = vmatprep.subr.bf16.mxu0 0
        %455 = vmatpush1.bf16.xpose.msra.mxu0 0
        %456 = vmatprep.subr.bf16.mxu0 0
        %457 = vmatpush1.bf16.xpose.msra.mxu0 0
        %458 = vmatprep.subr.bf16.mxu0 0
        %459 = vmatpush1.bf16.xpose.msra.mxu0 0
        %460 = vmatprep.subr.bf16.mxu0 0
        %461 = vmatpush1.bf16.xpose.msra.mxu0 0
        %462 = vmatprep.subr.bf16.mxu0 0
        %463 = vmatpush1.bf16.xpose.msra.mxu0 0
        %464 = vmatprep.subr.bf16.mxu0 0
        %465 = vmatpush1.bf16.xpose.msra.mxu0 0
        %466 = vmatprep.subr.bf16.mxu0 0
        %467 = vmatpush1.bf16.xpose.msra.mxu0 0
        %468 = vmatprep.subr.bf16.mxu0 0
        %469 = vmatpush1.bf16.xpose.msra.mxu0 0
        %470 = vmatprep.subr.bf16.mxu0 0
        %471 = vmatpush1.bf16.xpose.msra.mxu0 0
        %472 = vmatprep.subr.bf16.mxu0 0
        %473 = vmatpush1.bf16.xpose.msra.mxu0 0
        %474 = vmatprep.subr.bf16.mxu0 0
        %475 = vmatpush1.bf16.xpose.msra.mxu0 0
        %476 = vmatprep.subr.bf16.mxu0 0
        %477 = vmatpush1.bf16.xpose.msra.mxu0 0
        %478 = vmatprep.subr.bf16.mxu0 0
        %479 = vmatpush1.bf16.xpose.msra.mxu0 0
        %480 = vmatprep.subr.bf16.mxu0 0
        %481 = vmatpush1.bf16.xpose.msra.mxu0 0
        %482 = vmatprep.mubr.bf16.mxu0 0
        %483 = vmatmul.mubr.bf16.gmra.mrb[0].mxu0 %v445
        %v484 = vpop.f32.mrb[0].mxu0
        %v485 = vadd.f32 %v421, %v484
        %v486 = vpop.f32.mrb[0].mxu0
        %v487 = vpop.f32.mrb[0].mxu0
        %v488 = vpop.f32.mrb[0].mxu0
        %489 = vdwg.mxu0
        %vm490 = vcmask 57344
        %491 = vst.msk [vmem:[%s228] sm:$0x1] %vm490, %v485
        %s492 = sand.u32 %s121, 1
        %s493 = scalar_lea.sflag [#allocation5], %s492
        %s494 = sand.u32 %s121, 1
        %s495 = scalar_lea.vmem [#allocation8], %s494
        // Predicated region
        $region45: #{tpu_custom_call.1} parent=35 // pred_check
          %p496 = pneg %p131
        $region46: #{tpu_custom_call.1} parent=35 // pred_check_branch
          %498 = sbr.rel (%p496) target = $region48
        $region47: #{tpu_custom_call.1} parent=35 // pred_region
          %s500 = ssub.s32 16, 16
          %501 = vsyncadd %s493, %s500
          %s502 = smul.addr %s24, 16
          %s503 = scalar_lea.hbm %s4, %s502
          %s505 = sshll.u32 %s495, 4
          %s506 = int_to_ptr.vmem [resolvable:$true] %s505
          %508 = dma.vmem_to_hbm [thread:$0]  %s506, 16, %s503, %s493
        $region48: #{tpu_custom_call.1} parent=35 // pred_fallthru
          _
      $region36: #{tpu_custom_call.1} parent=5 // pred_fallthru
        _
      %p509 = scmp.le.s32.totalorder 2, %s19
      // Predicated region
      $region49: #{tpu_custom_call.1} parent=5 // pred_check
        %p510 = pneg %p509
      $region50: #{tpu_custom_call.1} parent=5 // pred_check_branch
        %512 = sbr.rel (%p510) target = $region52
      $region51: #{tpu_custom_call.1} parent=5 // pred_region
        %s513 = ssub.s32 %s19, 2
        // Predicated region
        $region53: #{tpu_custom_call.1} parent=51 // pred_check
          %p514 = pneg %p137
        $region54: #{tpu_custom_call.1} parent=51 // pred_check_branch
          %516 = sbr.rel (%p514) target = $region56
        $region55: #{tpu_custom_call.1} parent=51 // pred_region
          %s517 = sand.u32 %s122, 1
          %s518 = scalar_lea.sflag [#allocation5], %s517
          %s519 = sand.u32 %s122, 1
          %s520 = scalar_lea.vmem [#allocation8], %s519
          %521 = dma.done %s518, 16
        $region56: #{tpu_custom_call.1} parent=51 // pred_fallthru
          _
      $region52: #{tpu_custom_call.1} parent=5 // pred_fallthru
        _
    $region6: #{tpu_custom_call.1} parent=1 // loop_footer
      %s23 = sadd.s32 1, %s19
    $region7: #{tpu_custom_call.1} parent=1 // loop_footer_branch
      %18 = sbr.rel target = $region3
    $region8: #{tpu_custom_call.1} parent=1 // loop_exit
      _
    %522 = vsyncpa [#allocation4], 1
    %s523 = scalar_lea.sflag [#allocation4], 1
    %524 = vsyncpa %s523, 1
    %525 = vsyncpa [#allocation7], 1
    %526 = vsyncpa [#allocation5], 1
    %s527 = scalar_lea.sflag [#allocation5], 1
    %528 = vsyncpa %s527, 1

</llo_original>
